<compile_context>
chip_gen: v5e
topology: v5e:2x2
jax: 0.10.0
libtpu: 0.0.40
codegen_flags: <defaults>
</compile_context>

<pallas_src>
import jax
import jax.numpy as jnp
from jax.experimental import pallas as pl
from jax.experimental.pallas import tpu as pltpu


def _mix_fc_kernel(o1_ref, o2_ref, w_ref, out_ref, cat_ref):
    """out = [o1 | o2 | 1 | 0] @ W_aug   (single fused K-pass on the MXU)."""
    B, d1 = o1_ref.shape
    d2 = o2_ref.shape[1]
    k = d1 + d2
    k_pad = cat_ref.shape[1]

    # Stage the virtual concat into VMEM scratch (two cheap in-VMEM stores).
    cat_ref[:, :d1] = o1_ref[...]
    cat_ref[:, d1:k] = o2_ref[...]

    # Tail = [1, 0, 0, ...]: the 1 multiplies the bias row of the augmented
    # weight, the zeros multiply its zero-padded rows.  Written explicitly
    # because scratch VMEM is uninitialized (garbage * 0 could be NaN).
    col = jax.lax.broadcasted_iota(jnp.int32, (B, k_pad - k), 1)
    cat_ref[:, k:] = jnp.where(col == 0, 1.0, 0.0).astype(cat_ref.dtype)

    # Single MXU matmul over the full (padded) contraction dim; bias included.
    out_ref[...] = jnp.dot(
        cat_ref[...], w_ref[...], preferred_element_type=jnp.float32
    ).astype(out_ref.dtype)


def mix_encoder_fc(output1, output2, w_fc, b_fc):
    """output1: (B, decoder_input_size)   -- gnn_encoder output
       output2: (B, hidden_size)          -- roberta pooler_output
       w_fc   : (dec+hid, siamese)        -- PyTorch fc.weight transposed
       b_fc   : (siamese,)                -- PyTorch fc.bias
    """
    B, d1 = output1.shape
    B2, d2 = output2.shape
    K, S = w_fc.shape
    assert B == B2 and K == d1 + d2 and b_fc.shape == (S,)

    # Layout guards (perf cliffs, not correctness):
    #   * S % 128 == 0 keeps output stores lane-dense (unmasked vst; masked
    #     vst.msk measured ~4.5x slower on the store path).
    #   * d1/d2 multiples of the f32 sublane pack keep the scratch-concat
    #     stores tile-friendly (use 16 for bf16, 32 for int8/fp8).
    assert S % 128 == 0, "siamese_input_size must be a multiple of 128"
    assert d1 % 8 == 0 and d2 % 8 == 0, "encoder output widths must be multiples of 8"

    dtype = output1.dtype

    # Bias folded into the weight at parameter-prep time: W_aug = [W; b; 0pad],
    # with K+1 padded up to the f32 sublane pack (8) so the augmented weight
    # stays tile-aligned.  Drops one DMA (4 -> 3 kernel inputs) and the
    # in-kernel broadcast-add.
    k_pad = ((K + 1 + 7) // 8) * 8
    w_aug = jnp.concatenate(
        [w_fc.astype(dtype),
         b_fc.astype(dtype).reshape(1, S),
         jnp.zeros((k_pad - K - 1, S), dtype)],
        axis=0)

    vmem = lambda: pl.BlockSpec(memory_space=pltpu.MemorySpace.VMEM)

    # Grid-less call: the whole problem fits trivially in VMEM, so no grid,
    # no pipeline prologue/epilogue, no double buffering (pure overhead here).
    #
    # TODO(synk): at serving shapes (B >> 8, hidden 768+) switch to a
    # batch-tiled grid: dimension_semantics=("parallel",) so v7x's 2 TCs split
    # the batch, W_aug given a BlockSpec whose index_map ignores the batch
    # index (weight stays resident, no per-tile re-DMA), bf16 operands into
    # the MXU with f32 accumulation, and tile sizes budgeted against v7x's
    # 64 MiB physical / v5e's 16 MiB scoped VMEM (raise vmem_limit_bytes via
    # pltpu.CompilerParams only as needed) rather than v6e's 128 MiB.
    return pl.pallas_call(
        _mix_fc_kernel,
        out_shape=jax.ShapeDtypeStruct((B, S), dtype),
        in_specs=[vmem(), vmem(), vmem()],
        out_specs=vmem(),
        scratch_shapes=[pltpu.VMEM((B, k_pad), dtype)],
    )(output1, output2, w_aug)


if __name__ == "__main__":
    key = jax.random.PRNGKey(0)
    k1, k2, k3, k4 = jax.random.split(key, 4)

    # Small shapes consistent with the module:
    #   decoder_input_size=32, roberta hidden_size=32, siamese_input_size=128
    B = 8
    decoder_input_size = 32
    hidden_size = 32
    siamese_input_size = 128

    # Stand-ins for gnn_encoder(...) and roberta(...).pooler_output
    output1 = jax.random.normal(k1, (B, decoder_input_size), dtype=jnp.float32)
    output2 = jax.random.normal(k2, (B, hidden_size), dtype=jnp.float32)

    # Deterministic fc parameters (PyTorch Linear(dec+hid, siamese)),
    # stored already transposed to (in_features, out_features).
    fan_in = decoder_input_size + hidden_size
    bound = 1.0 / (fan_in ** 0.5)
    w_fc = jax.random.uniform(k3, (fan_in, siamese_input_size),
                              minval=-bound, maxval=bound, dtype=jnp.float32)
    b_fc = jax.random.uniform(k4, (siamese_input_size,),
                              minval=-bound, maxval=bound, dtype=jnp.float32)

    out = mix_encoder_fc(output1, output2, w_fc, b_fc)
    out = jax.block_until_ready(out)

    # Reference check against plain JAX (concat + linear), matching the
    # PyTorch forward: fc(cat(output1, output2, dim=1)).
    ref = jnp.concatenate([output1, output2], axis=1) @ w_fc + b_fc
    assert out.shape == (B, siamese_input_size)
    assert jnp.allclose(out, ref, atol=1e-4, rtol=1e-4)

    print("KERNEL_OK")
</pallas_src>

<mosaic_0001>
module attributes {stable_mosaic.version = 11 : i64} {
  func.func @_mix_fc_kernel(%arg0: memref<8x32xf32, #tpu.memory_space<vmem>>, %arg1: memref<8x32xf32, #tpu.memory_space<vmem>>, %arg2: memref<72x128xf32, #tpu.memory_space<vmem>>, %arg3: memref<8x128xf32, #tpu.memory_space<vmem>>, %arg4: memref<8x72xf32, #tpu.memory_space<vmem>>) attributes {dimension_semantics = [], scalar_prefetch = 0 : i64, scratch_operands = 1 : i64, tpu.core_type = #tpu.core_type<tc>} {
    %c0 = arith.constant 0 : index
    %c0_0 = arith.constant 0 : index
    %0 = vector.load %arg0[%c0, %c0_0] : memref<8x32xf32, #tpu.memory_space<vmem>>, vector<8x32xf32>
    %c0_1 = arith.constant 0 : index
    %c0_2 = arith.constant 0 : index
    %1 = vector.load %arg4[%c0_1, %c0_2] : memref<8x72xf32, #tpu.memory_space<vmem>>, vector<8x32xf32>
    tpu.vector_store %arg4[%c0_1, %c0_2], %0 {strides = array<i32>} : memref<8x72xf32, #tpu.memory_space<vmem>>, vector<8x32xf32>,
    %c0_3 = arith.constant 0 : index
    %c0_4 = arith.constant 0 : index
    %2 = vector.load %arg1[%c0_3, %c0_4] : memref<8x32xf32, #tpu.memory_space<vmem>>, vector<8x32xf32>
    %c0_5 = arith.constant 0 : index
    %c32 = arith.constant 32 : index
    %3 = vector.load %arg4[%c0_5, %c32] : memref<8x72xf32, #tpu.memory_space<vmem>>, vector<8x32xf32>
    tpu.vector_store %arg4[%c0_5, %c32], %2 {strides = array<i32>} : memref<8x72xf32, #tpu.memory_space<vmem>>, vector<8x32xf32>,
    %4 = tpu.iota {dimensions = array<i32: 1>} : vector<8x8xi32>
    %c0_i32 = arith.constant 0 : i32
    %5 = vector.broadcast %c0_i32 : i32 to vector<8x8xi32>
    %6 = arith.cmpi eq, %4, %5 : vector<8x8xi32>
    %cst = arith.constant 1.000000e+00 : f32
    %cst_6 = arith.constant 0.000000e+00 : f32
    %7 = vector.broadcast %cst : f32 to vector<8x8xf32>
    %8 = vector.broadcast %cst_6 : f32 to vector<8x8xf32>
    %9 = arith.select %6, %7, %8 : vector<8x8xi1>, vector<8x8xf32>
    %c0_7 = arith.constant 0 : index
    %c64 = arith.constant 64 : index
    %10 = vector.load %arg4[%c0_7, %c64] : memref<8x72xf32, #tpu.memory_space<vmem>>, vector<8x8xf32>
    tpu.vector_store %arg4[%c0_7, %c64], %9 {strides = array<i32>} : memref<8x72xf32, #tpu.memory_space<vmem>>, vector<8x8xf32>,
    %c0_8 = arith.constant 0 : index
    %c0_9 = arith.constant 0 : index
    %11 = vector.load %arg4[%c0_8, %c0_9] : memref<8x72xf32, #tpu.memory_space<vmem>>, vector<8x72xf32>
    %c0_10 = arith.constant 0 : index
    %c0_11 = arith.constant 0 : index
    %12 = vector.load %arg2[%c0_10, %c0_11] : memref<72x128xf32, #tpu.memory_space<vmem>>, vector<72x128xf32>
    %cst_12 = arith.constant dense<0.000000e+00> : vector<8x128xf32>
    %13 = tpu.matmul %11, %12, %cst_12 {dimension_numbers = #tpu.dot_dimension_numbers<[1], [0], [0], [1], [0, 0, 1, 1], [], []>} : vector<8x72xf32>, vector<72x128xf32>, vector<8x128xf32> -> vector<8x128xf32>
    %c0_13 = arith.constant 0 : index
    %c0_14 = arith.constant 0 : index
    %14 = vector.load %arg3[%c0_13, %c0_14] : memref<8x128xf32, #tpu.memory_space<vmem>>, vector<8x128xf32>
    tpu.vector_store %arg3[%c0_13, %c0_14], %13 {strides = array<i32>} : memref<8x128xf32, #tpu.memory_space<vmem>>, vector<8x128xf32>,
    return
  }
}

</mosaic_0001>

<llo_original>
// kernel: tpu_custom_call.1
$region0: #{tpu_custom_call.1}
  #allocation0 [shape = 'u32[]', space=smem, size = 0x4, offset = 0x4, fixed_abs, tag = 'smem constant byte address 0x4 - core index']
  #allocation1 [shape = 'u32[72,128]{1,0:T(1,128)}', space=vmem, size = 0x9000, scoped, tag = 'internal scratch']
  #allocation2 [shape = 'f32[8,72]{1,0:T(8,128)}', space=vmem, size = 0x1000, scoped, tag = 'scratch operand']
  %s0 = inlined_call_operand.hbm [shape: f32[8,32], index: 0, kind: input, shape index: {}]
  %s1 = inlined_call_operand.hbm [shape: f32[8,32], index: 1, kind: input, shape index: {}]
  %s2 = inlined_call_operand.hbm [shape: f32[72,128], index: 2, kind: input, shape index: {}]
  %s3 = inlined_call_operand.hbm [shape: f32[8,128], index: 3, kind: output, shape index: {}]
  %s4 = sld [smem:[#allocation0]]
  $region34: #{tpu_custom_call.1} parent=0
    _
  %s6 = ssub.s32 1, %s4
  %s7 = scalar_select 0, %s6, %s4
  $region1: #{tpu_custom_call.1} parent=0
    #allocation3 [shape = 'u8[4096]{0}', space=vmem, size = 0x1000, scoped, tag = 'input window, operand 0, single buffered']
    #allocation4 [shape = 's32[1]{0}', space=sflag, size = 0x4, scoped, tag = 'scoped memory for tpu_custom_call.1']
    #allocation5 [shape = 's32[1]{0}', space=sflag, size = 0x4, scoped, tag = 'scoped memory for tpu_custom_call.1']
    #allocation6 [shape = 'u8[4096]{0}', space=vmem, size = 0x1000, scoped, tag = 'input window, operand 1, single buffered']
    #allocation7 [shape = 's32[1]{0}', space=sflag, size = 0x4, scoped, tag = 'scoped memory for tpu_custom_call.1']
    #allocation8 [shape = 'u8[36864]{0}', space=vmem, size = 0x9000, scoped, tag = 'input window, operand 2, single buffered']
    #allocation9 [shape = 'u8[4096]{0}', space=vmem, size = 0x1000, scoped, tag = 'output window, operand 0, single buffered']
    %8 = vsyncpa [#allocation4], 0
    %9 = vsyncpa [#allocation7], 0
    %10 = vsyncpa [#allocation5], 0
    // Predicated region
    $region2: #{tpu_custom_call.1} parent=1 // pred_check
      _
    $region3: #{tpu_custom_call.1} parent=1 // pred_check_branch
      %12 = sbr.rel (0) target = $region5
    $region4: #{tpu_custom_call.1} parent=1 // pred_region
      %14 = vsyncadd [#allocation4], 0
      %s16 = sshll.u32 %s0, 4
      %s17 = int_to_ptr.hbm [resolvable:$true] %s16
      %s18 = sshll.u32 [#allocation3], 4
      %s19 = int_to_ptr.vmem [resolvable:$true] %s18
      %21 = dma.hbm_to_vmem [thread:$0]  %s17, 128, %s19, [#allocation4]
    $region5: #{tpu_custom_call.1} parent=1 // pred_fallthru
      _
    // Predicated region
    $region6: #{tpu_custom_call.1} parent=1 // pred_check
      _
    $region7: #{tpu_custom_call.1} parent=1 // pred_check_branch
      %23 = sbr.rel (0) target = $region9
    $region8: #{tpu_custom_call.1} parent=1 // pred_region
      %25 = vsyncadd [#allocation7], 0
      %s27 = sshll.u32 %s1, 4
      %s28 = int_to_ptr.hbm [resolvable:$true] %s27
      %s29 = sshll.u32 [#allocation6], 4
      %s30 = int_to_ptr.vmem [resolvable:$true] %s29
      %32 = dma.hbm_to_vmem [thread:$0]  %s28, 128, %s30, [#allocation7]
    $region9: #{tpu_custom_call.1} parent=1 // pred_fallthru
      _
    // Predicated region
    $region10: #{tpu_custom_call.1} parent=1 // pred_check
      _
    $region11: #{tpu_custom_call.1} parent=1 // pred_check_branch
      %34 = sbr.rel (0) target = $region13
    $region12: #{tpu_custom_call.1} parent=1 // pred_region
      %36 = vsyncadd [#allocation7], 0
      %s37 = sshll.u32 %s2, 4
      %s38 = int_to_ptr.hbm [resolvable:$true] %s37
      %s39 = sshll.u32 [#allocation8], 4
      %s40 = int_to_ptr.vmem [resolvable:$true] %s39
      %45 = dma.hbm_to_vmem [thread:$0]  %s38, 1152, %s40, [#allocation7], 128, 128, 8
    $region13: #{tpu_custom_call.1} parent=1 // pred_fallthru
      _
    // Predicated region
    $region14: #{tpu_custom_call.1} parent=1 // pred_check
      _
    $region15: #{tpu_custom_call.1} parent=1 // pred_check_branch
      %47 = sbr.rel (0) target = $region17
    $region16: #{tpu_custom_call.1} parent=1 // pred_region
      %49 = dma.done [#allocation4], 128
    $region17: #{tpu_custom_call.1} parent=1 // pred_fallthru
      _
    // Predicated region
    $region18: #{tpu_custom_call.1} parent=1 // pred_check
      _
    $region19: #{tpu_custom_call.1} parent=1 // pred_check_branch
      %51 = sbr.rel (0) target = $region21
    $region20: #{tpu_custom_call.1} parent=1 // pred_region
      %53 = dma.done [#allocation7], 128
    $region21: #{tpu_custom_call.1} parent=1 // pred_fallthru
      _
    // Predicated region
    $region22: #{tpu_custom_call.1} parent=1 // pred_check
      _
    $region23: #{tpu_custom_call.1} parent=1 // pred_check_branch
      %55 = sbr.rel (0) target = $region25
    $region24: #{tpu_custom_call.1} parent=1 // pred_region
      %57 = dma.done [#allocation7], 1152
    $region25: #{tpu_custom_call.1} parent=1 // pred_fallthru
      _
    %v58 = vld [vmem:[#allocation3] sm:$0xff]
    %vm59 = vcmask 261120
    %60 = vst.msk [vmem:[#allocation2] sm:$0xff] %vm59, %v58
    %v61 = vld [vmem:[#allocation6] sm:$0xff]
    %63 = vrot.lane.b32.xlu0 %v61, 32
    %v64 = vpop.permute.xlu0 %63
    %vm66 = vcmask 523520
    %67 = vst.msk [vmem:[#allocation2] sm:$0xff] %vm66, %v64
    %v68 = vlaneseq
    %v69 = vand.u32 %v68, 127
    %vm70 = vcmp.eq.s32.totalorder %v69, 0
    %v71 = vsel %vm70, 1.0, 0.0
    %73 = vrot.lane.b32.xlu0 %v71, 64
    %v74 = vpop.permute.xlu0 %73
    %vm76 = vcmask 589312
    %77 = vst.msk [vmem:[#allocation2] sm:$0xff] %vm76, %v74
    %v78 = vld [vmem:[#allocation2] sm:$0xff]
    %v79 = vld [vmem:[#allocation8] sm:$0xff]
    %v80 = vld [vmem:[#allocation8 + $0x8] sm:$0xff]
    %v81 = vld [vmem:[#allocation8 + $0x10] sm:$0xff]
    %v82 = vld [vmem:[#allocation8 + $0x18] sm:$0xff]
    %v83 = vld [vmem:[#allocation8 + $0x20] sm:$0xff]
    %v84 = vld [vmem:[#allocation8 + $0x28] sm:$0xff]
    %v85 = vld [vmem:[#allocation8 + $0x30] sm:$0xff]
    %v86 = vld [vmem:[#allocation8 + $0x38] sm:$0xff]
    %v87 = vld [vmem:[#allocation8 + $0x40] sm:$0xff]
    %vm88 = vcmask 588800
    %v90 = vsel %vm88, %v78, 0
    %92 = vmatpush.msra.mxu0 0.0
    %93 = vmatpush.msra.mxu0 0.0
    %94 = vmatpush.msra.mxu0 0.0
    %95 = vmatpush.msra.mxu0 0.0
    %96 = vmatpush.msra.mxu0 0.0
    %97 = vmatpush.msra.mxu0 0.0
    %98 = vmatpush.msra.mxu0 0.0
    %99 = vmatpush.msra.mxu0 %v87
    %100 = vmatpush.msra.mxu0 %v86
    %101 = vmatpush.msra.mxu0 %v85
    %102 = vmatpush.msra.mxu0 %v84
    %103 = vmatpush.msra.mxu0 %v83
    %104 = vmatpush.msra.mxu0 %v82
    %105 = vmatpush.msra.mxu0 %v81
    %106 = vmatpush.msra.mxu0 %v80
    %107 = vmatpush.msra.mxu0 %v79
    %108 = vmatmul.f32.gmra.mxu0 %v90
    %v109 = vpop.f32.mrf.mxu0
    %v110 = vadd.f32 0.0, %v109
    %111 = vdwg.mxu0
    %112 = vst [vmem:[#allocation9] sm:$0xff] %v110
    // Predicated region
    $region26: #{tpu_custom_call.1} parent=1 // pred_check
      _
    $region27: #{tpu_custom_call.1} parent=1 // pred_check_branch
      %114 = sbr.rel (0) target = $region29
    $region28: #{tpu_custom_call.1} parent=1 // pred_region
      %116 = vsyncadd [#allocation5], 0
      %s118 = sshll.u32 [#allocation9], 4
      %s119 = int_to_ptr.vmem [resolvable:$true] %s118
      %s120 = sshll.u32 %s3, 4
      %s121 = int_to_ptr.hbm [resolvable:$true] %s120
      %123 = dma.vmem_to_hbm [thread:$0]  %s119, 128, %s121, [#allocation5]
    $region29: #{tpu_custom_call.1} parent=1 // pred_fallthru
      _
    // Predicated region
    $region30: #{tpu_custom_call.1} parent=1 // pred_check
      _
    $region31: #{tpu_custom_call.1} parent=1 // pred_check_branch
      %125 = sbr.rel (0) target = $region33
    $region32: #{tpu_custom_call.1} parent=1 // pred_region
      %127 = dma.done [#allocation5], 128
    $region33: #{tpu_custom_call.1} parent=1 // pred_fallthru
      _
    %128 = vsyncpa [#allocation4], 1
    %129 = vsyncpa [#allocation7], 1
    %130 = vsyncpa [#allocation5], 1

</llo_original>
